<compile_context>
chip_gen: v5e
topology: v5e:2x2
jax: 0.10.0
libtpu: 0.0.40
codegen_flags: <defaults>
</compile_context>

<pallas_src>
import functools

import jax
import jax.numpy as jnp
from jax import lax
from jax.experimental import pallas as pl
from jax.experimental.pallas import tpu as pltpu

LANES = 128                       # vreg lane width
CHUNK = 32                        # rows per inner iteration (int8-packing safe)
PIPE_BUDGET = 16 * 1024 * 1024    # double-buffered input-block budget (bytes)
VMEM_LIMIT = 32 * 1024 * 1024     # explicit scoped-VMEM request
_LN2 = 0.6931471805599453


def _round_up(x: int, m: int) -> int:
    return ((x + m - 1) // m) * m


def _logcosh_dice_kernel(p_ref, t_ref, oi_ref, os_ref, acc_i, acc_s, *,
                         rows, block_rows, bps, full_blocks, any_masked):
    c = pl.program_id(0)          # parallel split (TensorCore) index
    i = pl.program_id(1)          # sequential block index within the split
    g = c * bps + i               # global (unclamped) row-block index
    n_chunks = block_rows // CHUNK

    @pl.when(i == 0)
    def _():
        acc_i[...] = jnp.zeros_like(acc_i)
        acc_s[...] = jnp.zeros_like(acc_s)

    def accumulate(masked):
        def body(j, carry):
            ai, as_ = carry
            base = pl.multiple_of(j * CHUNK, CHUNK)
            p = p_ref[pl.ds(base, CHUNK), :].astype(jnp.float32)
            t = t_ref[pl.ds(base, CHUNK), :].astype(jnp.float32)
            if masked:
                row = (g * block_rows + base
                       + lax.broadcasted_iota(jnp.int32, (CHUNK, LANES), 0))
                valid = row < rows
                p = jnp.where(valid, p, 0.0)
                t = jnp.where(valid, t, 0.0)
            return ai + p * t, as_ + (p + t)

        zero = jnp.zeros((CHUNK, LANES), jnp.float32)
        ai, as_ = lax.fori_loop(0, n_chunks, body, (zero, zero),
                                unroll=min(4, n_chunks))
        acc_i[...] += ai
        acc_s[...] += as_

    if not any_masked:
        accumulate(False)                     # every block is fully valid
    elif full_blocks == 0:
        accumulate(True)                      # single (partial) block
    else:
        @pl.when(g < full_blocks)
        def _():
            accumulate(False)                 # fast path: no mask

        @pl.when(g >= full_blocks)
        def _():
            accumulate(True)                  # ragged tail / padded block

    @pl.when(i == bps - 1)
    def _():
        oi_ref[...] = acc_i[...].reshape(oi_ref.shape)
        os_ref[...] = acc_s[...].reshape(os_ref.shape)


def _prep(x):
    """Flatten and keep the narrowest dtype the kernel can stream."""
    x = x.reshape(-1)
    if x.dtype == jnp.bool_:
        return x.astype(jnp.uint8)            # 1 B/elem mask path
    if jnp.issubdtype(x.dtype, jnp.floating):
        if x.dtype in (jnp.float32, jnp.bfloat16):
            return x
        return x.astype(jnp.float32)
    if jnp.issubdtype(x.dtype, jnp.integer) and x.dtype.itemsize <= 4:
        return x
    return x.astype(jnp.float32)


def logcosh_dice_loss(pred, target, smooth: float = 1.0):
    """Pallas implementation of LogCoshDiceLoss.forward(pred, target)."""
    p = _prep(pred)
    t = _prep(target)
    n = p.shape[0]
    assert t.shape[0] == n, "pred and target must have the same numel"

    # Only a <=127-element tail pad so the lane reshape is legal.
    lane_pad = (-n) % LANES
    if lane_pad:
        p = jnp.pad(p, (0, lane_pad))
        t = jnp.pad(t, (0, lane_pad))
    rows = (n + lane_pad) // LANES
    p2 = p.reshape(rows, LANES)
    t2 = t.reshape(rows, LANES)

    # Dtype-aware block size: keep 2 inputs x 2 pipeline buffers <= PIPE_BUDGET.
    bytes_per_row = LANES * (p2.dtype.itemsize + t2.dtype.itemsize)
    budget_rows = max(CHUNK, (PIPE_BUDGET // (2 * bytes_per_row)) // CHUNK * CHUNK)

    # Split the row range across (up to) two TensorCores; harmless on 1-TC
    # chips where the "parallel" axis simply serializes.
    num_splits = 2 if rows >= 2 * CHUNK else 1
    block_rows = min(budget_rows, _round_up(pl.cdiv(rows, num_splits), CHUNK))
    nblocks = pl.cdiv(rows, block_rows)
    bps = pl.cdiv(nblocks, num_splits)          # blocks per split
    grid = (num_splits, bps)

    full_blocks = rows // block_rows            # blocks with no invalid rows
    any_masked = (num_splits * bps * block_rows) != rows

    kernel = functools.partial(
        _logcosh_dice_kernel,
        rows=rows, block_rows=block_rows, bps=bps,
        full_blocks=full_blocks, any_masked=any_masked)

    def in_map(c, i):
        # Clamp so a (rare) fully out-of-range padding block re-reads the last
        # real block instead of DMA'ing past the array; its contribution is
        # zeroed by the in-kernel row mask.
        return (jnp.minimum(c * bps + i, nblocks - 1), 0)

    out_block = pl.BlockSpec((1, CHUNK, LANES), lambda c, i: (c, 0, 0))

    part_i, part_s = pl.pallas_call(
        kernel,
        out_shape=(jax.ShapeDtypeStruct((num_splits, CHUNK, LANES), jnp.float32),
                   jax.ShapeDtypeStruct((num_splits, CHUNK, LANES), jnp.float32)),
        grid_spec=pltpu.PrefetchScalarGridSpec(
            num_scalar_prefetch=0,
            grid=grid,
            in_specs=[
                pl.BlockSpec((block_rows, LANES), in_map),
                pl.BlockSpec((block_rows, LANES), in_map),
            ],
            out_specs=[out_block, out_block],
            scratch_shapes=[
                pltpu.VMEM((CHUNK, LANES), jnp.float32),
                pltpu.VMEM((CHUNK, LANES), jnp.float32),
            ],
        ),
        compiler_params=pltpu.CompilerParams(
            dimension_semantics=("parallel", "arbitrary"),
            vmem_limit_bytes=VMEM_LIMIT,
        ),
        cost_estimate=pl.CostEstimate(
            flops=4 * rows * LANES,
            transcendentals=0,
            bytes_accessed=rows * bytes_per_row
                           + 2 * num_splits * CHUNK * LANES * 4,
        ),
    )(p2, t2)

    # Tiny epilogue in JAX: combine per-split partials, dice, stable log-cosh.
    intersection = jnp.sum(part_i)
    ab_sum = jnp.sum(part_s)
    dice = 1.0 - (2.0 * intersection + smooth) / (ab_sum + smooth)
    ax = jnp.abs(dice)
    return ax + jnp.log1p(jnp.exp(-2.0 * ax)) - _LN2


def _reference(pred, target, smooth: float = 1.0):
    iflat = pred.reshape(-1).astype(jnp.float32)
    tflat = target.reshape(-1).astype(jnp.float32)
    intersection = jnp.sum(iflat * tflat)
    dice = 1.0 - (2.0 * intersection + smooth) / (
        jnp.sum(iflat) + jnp.sum(tflat) + smooth)
    return jnp.log(jnp.cosh(dice))


if __name__ == "__main__":
    key = jax.random.PRNGKey(0)
    k1, k2, k3, k4 = jax.random.split(key, 4)

    # Case 1: small NCHW probabilities vs float mask (single partial block,
    # masked tail path).
    pr1 = jax.nn.sigmoid(jax.random.normal(k1, (2, 4, 16, 16), dtype=jnp.float32))
    gt1 = (jax.random.uniform(k2, (2, 4, 16, 16)) > 0.5).astype(jnp.float32)
    loss1 = logcosh_dice_loss(pr1, gt1, smooth=1.0)
    jax.block_until_ready(loss1)
    ref1 = _reference(pr1, gt1, smooth=1.0)
    assert jnp.allclose(loss1, ref1, atol=1e-5, rtol=1e-5), (loss1, ref1)

    # Case 2: larger input + bool target (narrow uint8 input path, 2-way
    # parallel split, unmasked fast path).
    pr2 = jax.nn.sigmoid(jax.random.normal(k3, (2, 4, 64, 64), dtype=jnp.float32))
    gt2 = jax.random.uniform(k4, (2, 4, 64, 64)) > 0.5
    loss2 = logcosh_dice_loss(pr2, gt2, smooth=1.0)
    jax.block_until_ready(loss2)
    ref2 = _reference(pr2, gt2, smooth=1.0)
    assert jnp.allclose(loss2, ref2, atol=1e-5, rtol=1e-5), (loss2, ref2)

    print("KERNEL_OK")
</pallas_src>

<mosaic_0001>
module attributes {stable_mosaic.version = 11 : i64} {
  func.func @_logcosh_dice_kernel(%arg0: i32, %arg1: i32, %arg2: memref<32x128xf32, #tpu.memory_space<vmem>>, %arg3: memref<32x128xf32, #tpu.memory_space<vmem>>, %arg4: memref<1x32x128xf32, #tpu.memory_space<vmem>>, %arg5: memref<1x32x128xf32, #tpu.memory_space<vmem>>, %arg6: memref<32x128xf32, #tpu.memory_space<vmem>>, %arg7: memref<32x128xf32, #tpu.memory_space<vmem>>) attributes {dimension_semantics = [#tpu.dimension_semantics<parallel>, #tpu.dimension_semantics<arbitrary>], iteration_bounds = array<i64: 1, 1>, scalar_prefetch = 0 : i64, scratch_operands = 2 : i64, tpu.core_type = #tpu.core_type<tc>, window_params = [{transform_indices = @transform_0, window_bounds = array<i64: 32, 128>}, {transform_indices = @transform_1, window_bounds = array<i64: 32, 128>}, {transform_indices = @transform_2, window_bounds = array<i64: 1, 32, 128>}, {transform_indices = @transform_3, window_bounds = array<i64: 1, 32, 128>}]} {
    %c1_i32 = arith.constant 1 : i32
    %0 = arith.muli %arg0, %c1_i32 : i32
    %1 = arith.addi %0, %arg1 : i32
    %c0_i32 = arith.constant 0 : i32
    %2 = arith.cmpi eq, %arg1, %c0_i32 : i32
    %3 = arith.extui %2 : i1 to i32
    %c0_i32_0 = arith.constant 0 : i32
    %4 = arith.cmpi ne, %3, %c0_i32_0 : i32
    scf.if %4 {
      %cst_17 = arith.constant 0.000000e+00 : f32
      %36 = vector.broadcast %cst_17 : f32 to vector<32x128xf32>
      %c0_18 = arith.constant 0 : index
      %c0_19 = arith.constant 0 : index
      %37 = vector.load %arg6[%c0_18, %c0_19] : memref<32x128xf32, #tpu.memory_space<vmem>>, vector<32x128xf32>
      tpu.vector_store %arg6[%c0_18, %c0_19], %36 {strides = array<i32>} : memref<32x128xf32, #tpu.memory_space<vmem>>, vector<32x128xf32>,
      %cst_20 = arith.constant 0.000000e+00 : f32
      %38 = vector.broadcast %cst_20 : f32 to vector<32x128xf32>
      %c0_21 = arith.constant 0 : index
      %c0_22 = arith.constant 0 : index
      %39 = vector.load %arg7[%c0_21, %c0_22] : memref<32x128xf32, #tpu.memory_space<vmem>>, vector<32x128xf32>
      tpu.vector_store %arg7[%c0_21, %c0_22], %38 {strides = array<i32>} : memref<32x128xf32, #tpu.memory_space<vmem>>, vector<32x128xf32>,
    } else {
    }
    %cst = arith.constant 0.000000e+00 : f32
    %5 = vector.broadcast %cst : f32 to vector<32x128xf32>
    %c0_i32_1 = arith.constant 0 : i32
    %c32_i32 = arith.constant 32 : i32
    %6 = arith.muli %c0_i32_1, %c32_i32 : i32
    %7 = tpu.assume_multiple %6, 32 : i32
    %8 = arith.index_cast %7 : i32 to index
    %c0 = arith.constant 0 : index
    %9 = vector.load %arg2[%8, %c0] : memref<32x128xf32, #tpu.memory_space<vmem>>, vector<32x128xf32>
    %10 = arith.index_cast %7 : i32 to index
    %c0_2 = arith.constant 0 : index
    %11 = vector.load %arg3[%10, %c0_2] : memref<32x128xf32, #tpu.memory_space<vmem>>, vector<32x128xf32>
    %c32_i32_3 = arith.constant 32 : i32
    %12 = arith.muli %1, %c32_i32_3 : i32
    %13 = arith.addi %12, %7 : i32
    %14 = tpu.iota {dimensions = array<i32: 0>} : vector<32x128xi32>
    %15 = vector.broadcast %13 : i32 to vector<32x128xi32>
    %16 = arith.addi %15, %14 : vector<32x128xi32>
    %c16_i32 = arith.constant 16 : i32
    %17 = vector.broadcast %c16_i32 : i32 to vector<32x128xi32>
    %18 = arith.cmpi slt, %16, %17 : vector<32x128xi32>
    %cst_4 = arith.constant 0.000000e+00 : f32
    %19 = vector.broadcast %cst_4 : f32 to vector<32x128xf32>
    %20 = arith.select %18, %9, %19 : vector<32x128xi1>, vector<32x128xf32>
    %cst_5 = arith.constant 0.000000e+00 : f32
    %21 = vector.broadcast %cst_5 : f32 to vector<32x128xf32>
    %22 = arith.select %18, %11, %21 : vector<32x128xi1>, vector<32x128xf32>
    %23 = arith.mulf %20, %22 : vector<32x128xf32>
    %24 = arith.addf %5, %23 : vector<32x128xf32>
    %25 = arith.addf %20, %22 : vector<32x128xf32>
    %26 = arith.addf %5, %25 : vector<32x128xf32>
    %c1_i32_6 = arith.constant 1 : i32
    %c0_7 = arith.constant 0 : index
    %c0_8 = arith.constant 0 : index
    %27 = vector.load %arg6[%c0_7, %c0_8] : memref<32x128xf32, #tpu.memory_space<vmem>>, vector<32x128xf32>
    %28 = arith.addf %27, %24 : vector<32x128xf32>
    %c0_9 = arith.constant 0 : index
    %c0_10 = arith.constant 0 : index
    %29 = vector.load %arg6[%c0_9, %c0_10] : memref<32x128xf32, #tpu.memory_space<vmem>>, vector<32x128xf32>
    tpu.vector_store %arg6[%c0_9, %c0_10], %28 {strides = array<i32>} : memref<32x128xf32, #tpu.memory_space<vmem>>, vector<32x128xf32>,
    %c0_11 = arith.constant 0 : index
    %c0_12 = arith.constant 0 : index
    %30 = vector.load %arg7[%c0_11, %c0_12] : memref<32x128xf32, #tpu.memory_space<vmem>>, vector<32x128xf32>
    %31 = arith.addf %30, %26 : vector<32x128xf32>
    %c0_13 = arith.constant 0 : index
    %c0_14 = arith.constant 0 : index
    %32 = vector.load %arg7[%c0_13, %c0_14] : memref<32x128xf32, #tpu.memory_space<vmem>>, vector<32x128xf32>
    tpu.vector_store %arg7[%c0_13, %c0_14], %31 {strides = array<i32>} : memref<32x128xf32, #tpu.memory_space<vmem>>, vector<32x128xf32>,
    %c0_i32_15 = arith.constant 0 : i32
    %33 = arith.cmpi eq, %arg1, %c0_i32_15 : i32
    %34 = arith.extui %33 : i1 to i32
    %c0_i32_16 = arith.constant 0 : i32
    %35 = arith.cmpi ne, %34, %c0_i32_16 : i32
    scf.if %35 {
      %c0_17 = arith.constant 0 : index
      %c0_18 = arith.constant 0 : index
      %36 = vector.load %arg6[%c0_17, %c0_18] : memref<32x128xf32, #tpu.memory_space<vmem>>, vector<32x128xf32>
      %37 = vector.shape_cast %36 : vector<32x128xf32> to vector<1x32x128xf32>
      %c0_19 = arith.constant 0 : index
      %c0_20 = arith.constant 0 : index
      %c0_21 = arith.constant 0 : index
      %38 = vector.load %arg4[%c0_19, %c0_20, %c0_21] : memref<1x32x128xf32, #tpu.memory_space<vmem>>, vector<1x32x128xf32>
      tpu.vector_store %arg4[%c0_19, %c0_20, %c0_21], %37 {strides = array<i32>} : memref<1x32x128xf32, #tpu.memory_space<vmem>>, vector<1x32x128xf32>,
      %c0_22 = arith.constant 0 : index
      %c0_23 = arith.constant 0 : index
      %39 = vector.load %arg7[%c0_22, %c0_23] : memref<32x128xf32, #tpu.memory_space<vmem>>, vector<32x128xf32>
      %40 = vector.shape_cast %39 : vector<32x128xf32> to vector<1x32x128xf32>
      %c0_24 = arith.constant 0 : index
      %c0_25 = arith.constant 0 : index
      %c0_26 = arith.constant 0 : index
      %41 = vector.load %arg5[%c0_24, %c0_25, %c0_26] : memref<1x32x128xf32, #tpu.memory_space<vmem>>, vector<1x32x128xf32>
      tpu.vector_store %arg5[%c0_24, %c0_25, %c0_26], %40 {strides = array<i32>} : memref<1x32x128xf32, #tpu.memory_space<vmem>>, vector<1x32x128xf32>,
    } else {
    }
    return
  }
  func.func @transform_0(%arg0: i32, %arg1: i32) -> (i32, i32) {
    %c1_i32 = arith.constant 1 : i32
    %0 = arith.muli %arg0, %c1_i32 : i32
    %1 = arith.addi %0, %arg1 : i32
    %c0_i32 = arith.constant 0 : i32
    %2 = arith.minsi %1, %c0_i32 : i32
    %c0_i32_0 = arith.constant 0 : i32
    %c0_i32_1 = arith.constant 0 : i32
    return %2, %c0_i32_0 : i32, i32
  }
  func.func @transform_1(%arg0: i32, %arg1: i32) -> (i32, i32) {
    %c1_i32 = arith.constant 1 : i32
    %0 = arith.muli %arg0, %c1_i32 : i32
    %1 = arith.addi %0, %arg1 : i32
    %c0_i32 = arith.constant 0 : i32
    %2 = arith.minsi %1, %c0_i32 : i32
    %c0_i32_0 = arith.constant 0 : i32
    %c0_i32_1 = arith.constant 0 : i32
    return %2, %c0_i32_0 : i32, i32
  }
  func.func @transform_2(%arg0: i32, %arg1: i32) -> (i32, i32, i32) {
    %c0_i32 = arith.constant 0 : i32
    %c0_i32_0 = arith.constant 0 : i32
    %c0_i32_1 = arith.constant 0 : i32
    return %arg0, %c0_i32, %c0_i32_0 : i32, i32, i32
  }
  func.func @transform_3(%arg0: i32, %arg1: i32) -> (i32, i32, i32) {
    %c0_i32 = arith.constant 0 : i32
    %c0_i32_0 = arith.constant 0 : i32
    %c0_i32_1 = arith.constant 0 : i32
    return %arg0, %c0_i32, %c0_i32_0 : i32, i32, i32
  }
}

</mosaic_0001>

<llo_original>
// kernel: tpu_custom_call.1
$region0: #{tpu_custom_call.1}
  #allocation0 [shape = 'u32[]', space=smem, size = 0x4, offset = 0x4, fixed_abs, tag = 'smem constant byte address 0x4 - core index']
  #allocation1 [shape = 'u32[72,128]{1,0:T(1,128)}', space=vmem, size = 0x9000, scoped, tag = 'internal scratch']
  #allocation2 [shape = 'f32[32,128]{1,0:T(8,128)}', space=vmem, size = 0x4000, scoped, tag = 'scratch operand']
  #allocation3 [shape = 'f32[32,128]{1,0:T(8,128)}', space=vmem, size = 0x4000, scoped, tag = 'scratch operand']
  %s0 = inlined_call_operand.hbm [shape: f32[16,128], index: 0, kind: input, shape index: {}]
  %s1 = inlined_call_operand.hbm [shape: f32[16,128], index: 1, kind: input, shape index: {}]
  %s2 = inlined_call_operand.hbm [shape: f32[1,32,128], index: 2, kind: output, shape index: {0}]
  %s3 = inlined_call_operand.hbm [shape: f32[1,32,128], index: 3, kind: output, shape index: {1}]
  %4 = xla_tuple %s2, %s3
  %s5 = sld [smem:[#allocation0]]
  $region42: #{tpu_custom_call.1} parent=0
    _
  %s7 = ssub.s32 1, %s5
  %s8 = scalar_select 0, %s7, %s5
  $region1: #{tpu_custom_call.1} parent=0
    #allocation4 [shape = 'u8[16384]{0}', space=vmem, size = 0x4000, scoped, tag = 'input window, operand 0, single buffered']
    #allocation5 [shape = 's32[1]{0}', space=sflag, size = 0x4, scoped, tag = 'scoped memory for tpu_custom_call.1']
    #allocation6 [shape = 's32[1]{0}', space=sflag, size = 0x4, scoped, tag = 'scoped memory for tpu_custom_call.1']
    #allocation7 [shape = 'u8[16384]{0}', space=vmem, size = 0x4000, scoped, tag = 'input window, operand 1, single buffered']
    #allocation8 [shape = 's32[1]{0}', space=sflag, size = 0x4, scoped, tag = 'scoped memory for tpu_custom_call.1']
    #allocation9 [shape = 'u8[16384]{0}', space=vmem, size = 0x4000, scoped, tag = 'output window, operand 0, single buffered']
    #allocation10 [shape = 'u8[16384]{0}', space=vmem, size = 0x4000, scoped, tag = 'output window, operand 1, single buffered']
    #allocation11 [shape = 's32[1]{0}', space=sflag, size = 0x4, scoped, tag = 'scoped memory for tpu_custom_call.1']
    %9 = vsyncpa [#allocation5], 0
    %10 = vsyncpa [#allocation8], 0
    %11 = vsyncpa [#allocation6], 0
    %12 = vsyncpa [#allocation11], 0
    // Predicated region
    $region2: #{tpu_custom_call.1} parent=1 // pred_check
      _
    $region3: #{tpu_custom_call.1} parent=1 // pred_check_branch
      %14 = sbr.rel (0) target = $region5
    $region4: #{tpu_custom_call.1} parent=1 // pred_region
      %s15 = sadd.s32 0, 0
      %p16 = scmp.lt.s32.totalorder %s15, 0
      %s17 = scalar_select %p16, %s15, 0
      %s18 = smul.u32 4, %s17
      %s19 = ssub.s32 2, %s18
      %s20 = smul.u32 8, %s19
      %s21 = ssub.s32 32, %s20
      %s22 = sshll.u32 %s21, 4
      %23 = vsyncadd [#allocation5], %s22
      %p24 = scmp.ne.s32.totalorder 0, %s20
      %s25 = smul.addr %s18, 8
      %s26 = scalar_lea.hbm %s0, %s25
      %s27 = smul.u32 8, %s19
      %s28 = sshll.u32 %s26, 4
      %s29 = int_to_ptr.hbm [resolvable:$true] %s28
      %s30 = sshll.u32 [#allocation4], 4
      %s31 = int_to_ptr.vmem [resolvable:$true] %s30
      %s32 = sshll.u32 %s27, 4
      %36 = dma.hbm_to_vmem [thread:$0]  (%p24), %s29, %s32, %s31, [#allocation5], 128, 128, 8
    $region5: #{tpu_custom_call.1} parent=1 // pred_fallthru
      _
    // Predicated region
    $region6: #{tpu_custom_call.1} parent=1 // pred_check
      _
    $region7: #{tpu_custom_call.1} parent=1 // pred_check_branch
      %38 = sbr.rel (0) target = $region9
    $region8: #{tpu_custom_call.1} parent=1 // pred_region
      %s39 = sadd.s32 0, 0
      %p40 = scmp.lt.s32.totalorder %s39, 0
      %s41 = scalar_select %p40, %s39, 0
      %s42 = smul.u32 4, %s41
      %s43 = ssub.s32 2, %s42
      %s44 = smul.u32 8, %s43
      %s45 = ssub.s32 32, %s44
      %s46 = sshll.u32 %s45, 4
      %47 = vsyncadd [#allocation8], %s46
      %p48 = scmp.ne.s32.totalorder 0, %s44
      %s49 = smul.addr %s42, 8
      %s50 = scalar_lea.hbm %s1, %s49
      %s51 = smul.u32 8, %s43
      %s52 = sshll.u32 %s50, 4
      %s53 = int_to_ptr.hbm [resolvable:$true] %s52
      %s54 = sshll.u32 [#allocation7], 4
      %s55 = int_to_ptr.vmem [resolvable:$true] %s54
      %s56 = sshll.u32 %s51, 4
      %60 = dma.hbm_to_vmem [thread:$0]  (%p48), %s53, %s56, %s55, [#allocation8], 128, 128, 8
    $region9: #{tpu_custom_call.1} parent=1 // pred_fallthru
      _
    // Predicated region
    $region10: #{tpu_custom_call.1} parent=1 // pred_check
      _
    $region11: #{tpu_custom_call.1} parent=1 // pred_check_branch
      %62 = sbr.rel (0) target = $region13
    $region12: #{tpu_custom_call.1} parent=1 // pred_region
      %64 = dma.done [#allocation5], 512
    $region13: #{tpu_custom_call.1} parent=1 // pred_fallthru
      _
    // Predicated region
    $region14: #{tpu_custom_call.1} parent=1 // pred_check
      _
    $region15: #{tpu_custom_call.1} parent=1 // pred_check_branch
      %66 = sbr.rel (0) target = $region17
    $region16: #{tpu_custom_call.1} parent=1 // pred_region
      %68 = dma.done [#allocation8], 512
    $region17: #{tpu_custom_call.1} parent=1 // pred_fallthru
      _
    %s69 = sadd.s32 0, 0
    %p70 = scmp.lt.s32.totalorder %s69, 0
    %s71 = scalar_select %p70, %s69, 0
    %s72 = smul.u32 4, %s71
    %s73 = ssub.s32 2, %s72
    %s74 = smul.u32 8, %s73
    %s75 = sadd.s32 0, 0
    %p76 = scmp.lt.s32.totalorder %s75, 0
    %s77 = scalar_select %p76, %s75, 0
    %s78 = smul.u32 4, %s77
    %s79 = ssub.s32 2, %s78
    %s80 = smul.u32 8, %s79
    %s81 = sadd.s32 0, 0
    %p82 = scmp.eq.s32.totalorder 0, 0
    // Predicated region
    $region18: #{tpu_custom_call.1} parent=1 // pred_check
      %p83 = pneg %p82
    $region19: #{tpu_custom_call.1} parent=1 // pred_check_branch
      %85 = sbr.rel (%p83) target = $region21
    $region20: #{tpu_custom_call.1} parent=1 // pred_region
      %86 = vst [vmem:[#allocation2] sm:$0xff] 0.0
      %87 = vst [vmem:[#allocation2 + $0x8] sm:$0xff] 0.0
      %88 = vst [vmem:[#allocation2 + $0x10] sm:$0xff] 0.0
      %89 = vst [vmem:[#allocation2 + $0x18] sm:$0xff] 0.0
      %90 = vst [vmem:[#allocation3] sm:$0xff] 0.0
      %91 = vst [vmem:[#allocation3 + $0x8] sm:$0xff] 0.0
      %92 = vst [vmem:[#allocation3 + $0x10] sm:$0xff] 0.0
      %93 = vst [vmem:[#allocation3 + $0x18] sm:$0xff] 0.0
    $region21: #{tpu_custom_call.1} parent=1 // pred_fallthru
      _
    %v94 = vld [vmem:[#allocation4] sm:$0xff]
    %v95 = vld [vmem:[#allocation4 + $0x8] sm:$0xff]
    %v96 = vld [vmem:[#allocation4 + $0x10] sm:$0xff]
    %v97 = vld [vmem:[#allocation4 + $0x18] sm:$0xff]
    %v98 = vld [vmem:[#allocation7] sm:$0xff]
    %v99 = vld [vmem:[#allocation7 + $0x8] sm:$0xff]
    %v100 = vld [vmem:[#allocation7 + $0x10] sm:$0xff]
    %v101 = vld [vmem:[#allocation7 + $0x18] sm:$0xff]
    %s102 = smul.u32 %s81, 32
    %s103 = sadd.s32 %s102, 0
    %v104 = vlaneseq
    %v105 = vshrl.u32 %v104, 7
    %v106 = vadd.s32 %v105, 8
    %v107 = vadd.s32 %v105, 16
    %v108 = vadd.s32 %v105, 24
    %v109 = vstv %s103
    %v110 = vadd.s32 %v109, %v105
    %v111 = vadd.s32 %v109, %v106
    %v112 = vadd.s32 %v109, %v107
    %v113 = vadd.s32 %v109, %v108
    %vm114 = vcmp.lt.s32.totalorder %v110, 16
    %vm115 = vcmp.lt.s32.totalorder %v111, 16
    %vm116 = vcmp.lt.s32.totalorder %v112, 16
    %vm117 = vcmp.lt.s32.totalorder %v113, 16
    %v118 = vsel %vm114, %v94, 0.0
    %v119 = vsel %vm115, %v95, 0.0
    %v120 = vsel %vm116, %v96, 0.0
    %v121 = vsel %vm117, %v97, 0.0
    %v122 = vsel %vm114, %v98, 0.0
    %v123 = vsel %vm115, %v99, 0.0
    %v124 = vsel %vm116, %v100, 0.0
    %v125 = vsel %vm117, %v101, 0.0
    %v126 = vmul.f32 %v118, %v122
    %v127 = vmul.f32 %v119, %v123
    %v128 = vmul.f32 %v120, %v124
    %v129 = vmul.f32 %v121, %v125
    %v130 = vadd.f32 %v126, 0.0
    %v131 = vadd.f32 %v127, 0.0
    %v132 = vadd.f32 %v128, 0.0
    %v133 = vadd.f32 %v129, 0.0
    %v134 = vadd.f32 %v118, %v122
    %v135 = vadd.f32 %v119, %v123
    %v136 = vadd.f32 %v120, %v124
    %v137 = vadd.f32 %v121, %v125
    %v138 = vadd.f32 %v134, 0.0
    %v139 = vadd.f32 %v135, 0.0
    %v140 = vadd.f32 %v136, 0.0
    %v141 = vadd.f32 %v137, 0.0
    %v142 = vld [vmem:[#allocation2] sm:$0xff]
    %v143 = vld [vmem:[#allocation2 + $0x8] sm:$0xff]
    %v144 = vld [vmem:[#allocation2 + $0x10] sm:$0xff]
    %v145 = vld [vmem:[#allocation2 + $0x18] sm:$0xff]
    %v146 = vadd.f32 %v142, %v130
    %v147 = vadd.f32 %v143, %v131
    %v148 = vadd.f32 %v144, %v132
    %v149 = vadd.f32 %v145, %v133
    %150 = vst [vmem:[#allocation2] sm:$0xff] %v146
    %151 = vst [vmem:[#allocation2 + $0x8] sm:$0xff] %v147
    %152 = vst [vmem:[#allocation2 + $0x10] sm:$0xff] %v148
    %153 = vst [vmem:[#allocation2 + $0x18] sm:$0xff] %v149
    %v154 = vld [vmem:[#allocation3] sm:$0xff]
    %v155 = vld [vmem:[#allocation3 + $0x8] sm:$0xff]
    %v156 = vld [vmem:[#allocation3 + $0x10] sm:$0xff]
    %v157 = vld [vmem:[#allocation3 + $0x18] sm:$0xff]
    %v158 = vadd.f32 %v154, %v138
    %v159 = vadd.f32 %v155, %v139
    %v160 = vadd.f32 %v156, %v140
    %v161 = vadd.f32 %v157, %v141
    %162 = vst [vmem:[#allocation3] sm:$0xff] %v158
    %163 = vst [vmem:[#allocation3 + $0x8] sm:$0xff] %v159
    %164 = vst [vmem:[#allocation3 + $0x10] sm:$0xff] %v160
    %165 = vst [vmem:[#allocation3 + $0x18] sm:$0xff] %v161
    // Predicated region
    $region22: #{tpu_custom_call.1} parent=1 // pred_check
      %p166 = pneg %p82
    $region23: #{tpu_custom_call.1} parent=1 // pred_check_branch
      %168 = sbr.rel (%p166) target = $region25
    $region24: #{tpu_custom_call.1} parent=1 // pred_region
      %v169 = vld [vmem:[#allocation2] sm:$0xff]
      %v170 = vld [vmem:[#allocation2 + $0x8] sm:$0xff]
      %v171 = vld [vmem:[#allocation2 + $0x10] sm:$0xff]
      %v172 = vld [vmem:[#allocation2 + $0x18] sm:$0xff]
      %173 = vst [vmem:[#allocation9] sm:$0xff] %v169
      %174 = vst [vmem:[#allocation9 + $0x8] sm:$0xff] %v170
      %175 = vst [vmem:[#allocation9 + $0x10] sm:$0xff] %v171
      %176 = vst [vmem:[#allocation9 + $0x18] sm:$0xff] %v172
      %v177 = vld [vmem:[#allocation3] sm:$0xff]
      %v178 = vld [vmem:[#allocation3 + $0x8] sm:$0xff]
      %v179 = vld [vmem:[#allocation3 + $0x10] sm:$0xff]
      %v180 = vld [vmem:[#allocation3 + $0x18] sm:$0xff]
      %181 = vst [vmem:[#allocation10] sm:$0xff] %v177
      %182 = vst [vmem:[#allocation10 + $0x8] sm:$0xff] %v178
      %183 = vst [vmem:[#allocation10 + $0x10] sm:$0xff] %v179
      %184 = vst [vmem:[#allocation10 + $0x18] sm:$0xff] %v180
    $region25: #{tpu_custom_call.1} parent=1 // pred_fallthru
      _
    // Predicated region
    $region26: #{tpu_custom_call.1} parent=1 // pred_check
      _
    $region27: #{tpu_custom_call.1} parent=1 // pred_check_branch
      %186 = sbr.rel (0) target = $region29
    $region28: #{tpu_custom_call.1} parent=1 // pred_region
      %188 = vsyncadd [#allocation6], 0
      %s189 = sshll.u32 [#allocation9], 4
      %s190 = int_to_ptr.vmem [resolvable:$true] %s189
      %s191 = sshll.u32 %s2, 4
      %s192 = int_to_ptr.hbm [resolvable:$true] %s191
      %197 = dma.vmem_to_hbm [thread:$0]  %s190, 512, %s192, [#allocation6], 128, 128, 8
    $region29: #{tpu_custom_call.1} parent=1 // pred_fallthru
      _
    // Predicated region
    $region30: #{tpu_custom_call.1} parent=1 // pred_check
      _
    $region31: #{tpu_custom_call.1} parent=1 // pred_check_branch
      %199 = sbr.rel (0) target = $region33
    $region32: #{tpu_custom_call.1} parent=1 // pred_region
      %201 = vsyncadd [#allocation11], 0
      %s202 = sshll.u32 [#allocation10], 4
      %s203 = int_to_ptr.vmem [resolvable:$true] %s202
      %s204 = sshll.u32 %s3, 4
      %s205 = int_to_ptr.hbm [resolvable:$true] %s204
      %210 = dma.vmem_to_hbm [thread:$0]  %s203, 512, %s205, [#allocation11], 128, 128, 8
    $region33: #{tpu_custom_call.1} parent=1 // pred_fallthru
      _
    // Predicated region
    $region34: #{tpu_custom_call.1} parent=1 // pred_check
      _
    $region35: #{tpu_custom_call.1} parent=1 // pred_check_branch
      %212 = sbr.rel (0) target = $region37
    $region36: #{tpu_custom_call.1} parent=1 // pred_region
      %214 = dma.done [#allocation6], 512
    $region37: #{tpu_custom_call.1} parent=1 // pred_fallthru
      _
    // Predicated region
    $region38: #{tpu_custom_call.1} parent=1 // pred_check
      _
    $region39: #{tpu_custom_call.1} parent=1 // pred_check_branch
      %216 = sbr.rel (0) target = $region41
    $region40: #{tpu_custom_call.1} parent=1 // pred_region
      %218 = dma.done [#allocation11], 512
    $region41: #{tpu_custom_call.1} parent=1 // pred_fallthru
      _
    %219 = vsyncpa [#allocation5], 1
    %220 = vsyncpa [#allocation8], 1
    %221 = vsyncpa [#allocation6], 1
    %222 = vsyncpa [#allocation11], 1

</llo_original>
